<compile_context>
chip_gen: v7x
topology: tpu7x:2x2x1
jax: 0.10.0
libtpu: 0.0.40
codegen_flags: <defaults>
</compile_context>

<pallas_src>
import functools

import jax
import jax.numpy as jnp
from jax.experimental import pallas as pl
from jax.experimental.pallas import tpu as pltpu


def _round_up(x, m):
    return ((x + m - 1) // m) * m


# --------------------------------------------------------------------------
# Kernel
# --------------------------------------------------------------------------
def _dff_kernel(x_ref, s_ref, x2_ref, w1_ref, w2_ref, w3_ref, b_ref, out_ref,
                *, c3, att_row):
    # x_ref/s_ref/x2_ref : (1, C, TILE_HW)   streamed activations (bf16/f32)
    # w*_ref             : (1, R, C)         per-batch fused weight blocks:
    #                        rows 0..3C-1        = w_redu * att_ch (gate folded)
    #                        rows 3C..att_row-1  = zeros (sublane alignment pad)
    #                        row  att_row        = spatial-attention row (w1/w2/w3)
    #                        rows att_row+1..R-1 = zeros
    # b_ref              : (1, 1) SMEM scalar = b1 + b2 + b3
    # out_ref            : (1, 3C, TILE_HW)
    f = jnp.dot(w1_ref[0], x_ref[0], preferred_element_type=jnp.float32)
    f = f + jnp.dot(w2_ref[0], s_ref[0], preferred_element_type=jnp.float32)
    f = f + jnp.dot(w3_ref[0], x2_ref[0], preferred_element_type=jnp.float32)

    att_sp = jax.nn.sigmoid(f[att_row:att_row + 1, :] + b_ref[0, 0])  # (1, TILE)
    out_ref[0] = (f[:c3, :] * att_sp).astype(out_ref.dtype)


# --------------------------------------------------------------------------
# Tiling helpers
# --------------------------------------------------------------------------
def _vmem_budget_and_limit():
    """Generation-aware VMEM budget / scoped limit (conservative v7x default)."""
    phys = 64 * 1024 * 1024
    try:
        info = pltpu.get_tpu_info()
        phys = int(getattr(info, "vmem_capacity_bytes", phys)) or phys
    except Exception:
        pass
    budget = int(phys * 0.55)
    limit = min(int(phys * 0.75), phys - (8 << 20))
    return budget, max(limit, budget + (4 << 20))


def _pick_tile_hw(hw, c, c3, r_rows, in_itemsize, out_itemsize,
                  vmem_budget_bytes, batch, max_tile=16384):
    # Bytes that scale per unit of tile_hw:
    #   3 double-buffered input blocks + double-buffered output block
    #   + f32 matmul intermediate / gated result / att row.
    per_col = (2 * 3 * c * in_itemsize
               + 2 * c3 * out_itemsize
               + (r_rows + c3 + 1) * 4)
    const = 2 * 3 * r_rows * c * in_itemsize + (2 << 20)       # weights + slack
    avail = max(vmem_budget_bytes - const, per_col * 128)
    cap = max(128, min(max_tile, (avail // per_col) // 128 * 128))

    tile = min(cap, _round_up(hw, 128))
    hw_pad = _round_up(hw, tile)

    # v7x megacore: a B == 1 launch should still expose >= 2 parallel steps.
    if batch == 1 and hw_pad // tile < 2 and tile > 128:
        tile = max(128, _round_up(tile // 2, 128))
        hw_pad = _round_up(hw, tile)
    return tile, hw_pad


# --------------------------------------------------------------------------
# Forward wrapper
# --------------------------------------------------------------------------
def dff_forward(x, skip, x2, params, *,
                compute_dtype=jnp.bfloat16, out_dtype=jnp.float32,
                tile_hw=None):
    """x, skip, x2: NCHW arrays of shape (B, C, H, W)."""
    B, C, H, W = x.shape
    C3 = 3 * C
    HW = H * W
    in_itemsize = jnp.dtype(compute_dtype).itemsize
    out_itemsize = jnp.dtype(out_dtype).itemsize

    att_row = _round_up(C3, 8)        # sublane-aligned spatial-attention row
    R = att_row + 8                   # fused-weight rows (multiple of 8)

    # --- Hoisted pooled path (tiny; stays f32 / HIGHEST precision) ---------
    # channel mean of concat([x, skip, x2]) == concat of per-input channel means
    mean = jnp.concatenate(
        [x.mean(axis=(2, 3)), skip.mean(axis=(2, 3)), x2.mean(axis=(2, 3))],
        axis=1).astype(jnp.float32)                                     # (B, 3C)
    att_ch = jax.nn.sigmoid(
        jnp.dot(mean, params["w_atten"].T.astype(jnp.float32),
                precision=jax.lax.Precision.HIGHEST))                   # (B, 3C)

    # --- Fold channel gate into w_redu, split per input, pad rows ----------
    w_redu_gated = (params["w_redu"].astype(jnp.float32)[None, :, :]
                    * att_ch[:, None, :])                                # (B,3C,3C)

    def _wblock(lo, w_sp):
        blk = jnp.zeros((B, R, C), jnp.float32)
        blk = blk.at[:, :C3, :].set(w_redu_gated[:, :, lo:lo + C])
        blk = blk.at[:, att_row, :].set(
            jnp.broadcast_to(w_sp.reshape(1, C), (B, C)))
        return blk.astype(compute_dtype)

    wf1 = _wblock(0, params["w1"])
    wf2 = _wblock(C, params["w2"])
    wf3 = _wblock(2 * C, params["w3"])

    b_sum = (params["b1"] + params["b2"] + params["b3"]
             ).reshape(1, 1).astype(jnp.float32)                         # SMEM

    # --- Tiling / padding ---------------------------------------------------
    vmem_budget, vmem_limit = _vmem_budget_and_limit()
    if tile_hw is None:
        tile_hw, hw_pad = _pick_tile_hw(HW, C, C3, R, in_itemsize,
                                        out_itemsize, vmem_budget, B)
    else:
        assert tile_hw % 128 == 0
        hw_pad = _round_up(HW, tile_hw)

    def _prep(a):
        a = a.reshape(B, C, HW).astype(compute_dtype)
        if hw_pad != HW:
            a = jnp.pad(a, ((0, 0), (0, 0), (0, hw_pad - HW)))
        return a

    x_p, s_p, x2_p = _prep(x), _prep(skip), _prep(x2)

    n_tiles = hw_pad // tile_hw
    grid = (B, n_tiles)   # spatial axis innermost: per-batch weights DMA'd once/batch

    cost = pl.CostEstimate(
        flops=int(2 * B * R * C3 * hw_pad),
        transcendentals=int(B * hw_pad),
        bytes_accessed=int(3 * B * C * hw_pad * in_itemsize
                           + 3 * B * R * C * in_itemsize
                           + B * C3 * hw_pad * out_itemsize),
    )

    kernel = functools.partial(_dff_kernel, c3=C3, att_row=att_row)

    act_spec = pl.BlockSpec((1, C, tile_hw), lambda b, s: (b, 0, s))
    # NOTE: weight index_map must stay constant along the innermost (spatial)
    # grid axis so Pallas skips the re-DMA between consecutive steps.
    w_spec = pl.BlockSpec((1, R, C), lambda b, s: (b, 0, 0))

    out_flat = pl.pallas_call(
        kernel,
        out_shape=jax.ShapeDtypeStruct((B, C3, hw_pad), out_dtype),
        grid_spec=pltpu.PrefetchScalarGridSpec(
            num_scalar_prefetch=0,
            grid=grid,
            in_specs=[
                act_spec, act_spec, act_spec,
                w_spec, w_spec, w_spec,
                pl.BlockSpec(memory_space=pltpu.MemorySpace.SMEM),   # scalar bias
            ],
            out_specs=pl.BlockSpec((1, C3, tile_hw), lambda b, s: (b, 0, s)),
        ),
        compiler_params=pltpu.CompilerParams(
            dimension_semantics=("parallel", "parallel"),
            vmem_limit_bytes=int(vmem_limit),
        ),
        cost_estimate=cost,
    )(x_p, s_p, x2_p, wf1, wf2, wf3, b_sum)

    if hw_pad != HW:
        out_flat = out_flat[:, :, :HW]
    return out_flat.reshape(B, C3, H, W)


# --------------------------------------------------------------------------
# Plain-JAX reference (mirrors the PyTorch forward, NCHW)
# --------------------------------------------------------------------------
def dff_reference(x, skip, x2, p):
    hi = jax.lax.Precision.HIGHEST
    out = jnp.concatenate([x, skip, x2], axis=1)
    mean = out.mean(axis=(2, 3), keepdims=True)
    att = jax.nn.sigmoid(jnp.einsum("oi,bihw->bohw", p["w_atten"], mean, precision=hi))
    out = out * att
    out = jnp.einsum("oi,bihw->bohw", p["w_redu"], out, precision=hi)
    att2 = (
        jnp.einsum("oi,bihw->bohw", p["w1"], x, precision=hi) + p["b1"].reshape(1, -1, 1, 1)
        + jnp.einsum("oi,bihw->bohw", p["w2"], skip, precision=hi) + p["b2"].reshape(1, -1, 1, 1)
        + jnp.einsum("oi,bihw->bohw", p["w3"], x2, precision=hi) + p["b3"].reshape(1, -1, 1, 1)
    )
    return out * jax.nn.sigmoid(att2)


def init_params(key, dim):
    c3 = 3 * dim
    ks = jax.random.split(key, 8)
    scale = 0.1
    return {
        "w_atten": scale * jax.random.normal(ks[0], (c3, c3), jnp.float32),
        "w_redu": scale * jax.random.normal(ks[1], (c3, c3), jnp.float32),
        "w1": scale * jax.random.normal(ks[2], (1, dim), jnp.float32),
        "b1": scale * jax.random.normal(ks[3], (1,), jnp.float32),
        "w2": scale * jax.random.normal(ks[4], (1, dim), jnp.float32),
        "b2": scale * jax.random.normal(ks[5], (1,), jnp.float32),
        "w3": scale * jax.random.normal(ks[6], (1, dim), jnp.float32),
        "b3": scale * jax.random.normal(ks[7], (1,), jnp.float32),
    }


if __name__ == "__main__":
    B, C, H, W = 2, 4, 16, 16
    key = jax.random.PRNGKey(0)
    kx, ks, k2, kp = jax.random.split(key, 4)
    x = jax.random.normal(kx, (B, C, H, W), jnp.float32)
    skip = jax.random.normal(ks, (B, C, H, W), jnp.float32)
    x2 = jax.random.normal(k2, (B, C, H, W), jnp.float32)
    params = init_params(kp, C)

    out = jax.block_until_ready(dff_forward(x, skip, x2, params))
    ref = dff_reference(x, skip, x2, params)

    assert out.shape == (B, 3 * C, H, W)
    # bf16-streamed operands (deliberate perf trade-off) => loosened tolerance.
    assert jnp.allclose(out, ref, atol=3e-2, rtol=3e-2), "mismatch vs reference"
    print("KERNEL_OK")
</pallas_src>

<mosaic_0001>
module attributes {stable_mosaic.version = 11 : i64} {
  func.func @_dff_kernel(%arg0: i32, %arg1: i32, %arg2: memref<1x4x256xbf16, #tpu.memory_space<vmem>>, %arg3: memref<1x4x256xbf16, #tpu.memory_space<vmem>>, %arg4: memref<1x4x256xbf16, #tpu.memory_space<vmem>>, %arg5: memref<1x24x4xbf16, #tpu.memory_space<vmem>>, %arg6: memref<1x24x4xbf16, #tpu.memory_space<vmem>>, %arg7: memref<1x24x4xbf16, #tpu.memory_space<vmem>>, %arg8: memref<1x1xf32, #tpu.memory_space<smem>>, %arg9: memref<1x12x256xf32, #tpu.memory_space<vmem>>) attributes {dimension_semantics = [#tpu.dimension_semantics<parallel>, #tpu.dimension_semantics<parallel>], iteration_bounds = array<i64: 2, 1>, scalar_prefetch = 0 : i64, scratch_operands = 0 : i64, tpu.core_type = #tpu.core_type<tc>, window_params = [{transform_indices = @transform_0, window_bounds = array<i64: 1, 4, 256>}, {transform_indices = @transform_1, window_bounds = array<i64: 1, 4, 256>}, {transform_indices = @transform_2, window_bounds = array<i64: 1, 4, 256>}, {transform_indices = @transform_3, window_bounds = array<i64: 1, 24, 4>}, {transform_indices = @transform_4, window_bounds = array<i64: 1, 24, 4>}, {transform_indices = @transform_5, window_bounds = array<i64: 1, 24, 4>}, {transform_indices = @transform_6, window_bounds = array<i64: 1, 1>}, {transform_indices = @transform_7, window_bounds = array<i64: 1, 12, 256>}]} {
    %c0 = arith.constant 0 : index
    %c0_0 = arith.constant 0 : index
    %c0_1 = arith.constant 0 : index
    %0 = vector.load %arg5[%c0, %c0_0, %c0_1] : memref<1x24x4xbf16, #tpu.memory_space<vmem>>, vector<1x24x4xbf16>
    %1 = vector.shape_cast %0 : vector<1x24x4xbf16> to vector<24x4xbf16>
    %c0_2 = arith.constant 0 : index
    %c0_3 = arith.constant 0 : index
    %c0_4 = arith.constant 0 : index
    %2 = vector.load %arg2[%c0_2, %c0_3, %c0_4] : memref<1x4x256xbf16, #tpu.memory_space<vmem>>, vector<1x4x256xbf16>
    %3 = vector.shape_cast %2 : vector<1x4x256xbf16> to vector<4x256xbf16>
    %cst = arith.constant dense<0.000000e+00> : vector<24x256xf32>
    %4 = tpu.matmul %1, %3, %cst {dimension_numbers = #tpu.dot_dimension_numbers<[1], [0], [0], [1], [0, 0, 1, 1], [], []>} : vector<24x4xbf16>, vector<4x256xbf16>, vector<24x256xf32> -> vector<24x256xf32>
    %c0_5 = arith.constant 0 : index
    %c0_6 = arith.constant 0 : index
    %c0_7 = arith.constant 0 : index
    %5 = vector.load %arg6[%c0_5, %c0_6, %c0_7] : memref<1x24x4xbf16, #tpu.memory_space<vmem>>, vector<1x24x4xbf16>
    %6 = vector.shape_cast %5 : vector<1x24x4xbf16> to vector<24x4xbf16>
    %c0_8 = arith.constant 0 : index
    %c0_9 = arith.constant 0 : index
    %c0_10 = arith.constant 0 : index
    %7 = vector.load %arg3[%c0_8, %c0_9, %c0_10] : memref<1x4x256xbf16, #tpu.memory_space<vmem>>, vector<1x4x256xbf16>
    %8 = vector.shape_cast %7 : vector<1x4x256xbf16> to vector<4x256xbf16>
    %cst_11 = arith.constant dense<0.000000e+00> : vector<24x256xf32>
    %9 = tpu.matmul %6, %8, %cst_11 {dimension_numbers = #tpu.dot_dimension_numbers<[1], [0], [0], [1], [0, 0, 1, 1], [], []>} : vector<24x4xbf16>, vector<4x256xbf16>, vector<24x256xf32> -> vector<24x256xf32>
    %10 = arith.addf %4, %9 : vector<24x256xf32>
    %c0_12 = arith.constant 0 : index
    %c0_13 = arith.constant 0 : index
    %c0_14 = arith.constant 0 : index
    %11 = vector.load %arg7[%c0_12, %c0_13, %c0_14] : memref<1x24x4xbf16, #tpu.memory_space<vmem>>, vector<1x24x4xbf16>
    %12 = vector.shape_cast %11 : vector<1x24x4xbf16> to vector<24x4xbf16>
    %c0_15 = arith.constant 0 : index
    %c0_16 = arith.constant 0 : index
    %c0_17 = arith.constant 0 : index
    %13 = vector.load %arg4[%c0_15, %c0_16, %c0_17] : memref<1x4x256xbf16, #tpu.memory_space<vmem>>, vector<1x4x256xbf16>
    %14 = vector.shape_cast %13 : vector<1x4x256xbf16> to vector<4x256xbf16>
    %cst_18 = arith.constant dense<0.000000e+00> : vector<24x256xf32>
    %15 = tpu.matmul %12, %14, %cst_18 {dimension_numbers = #tpu.dot_dimension_numbers<[1], [0], [0], [1], [0, 0, 1, 1], [], []>} : vector<24x4xbf16>, vector<4x256xbf16>, vector<24x256xf32> -> vector<24x256xf32>
    %16 = arith.addf %10, %15 : vector<24x256xf32>
    %17 = vector.extract_strided_slice %16 {offsets = [16, 0], sizes = [1, 256], strides = [1, 1]} : vector<24x256xf32> to vector<1x256xf32>
    %c0_19 = arith.constant 0 : index
    %c0_20 = arith.constant 0 : index
    %18 = memref.load %arg8[%c0_19, %c0_20] : memref<1x1xf32, #tpu.memory_space<smem>>
    %19 = vector.broadcast %18 : f32 to vector<1x256xf32>
    %20 = arith.addf %17, %19 : vector<1x256xf32>
    %21 = arith.negf %20 : vector<1x256xf32>
    %22 = math.exp %21 : vector<1x256xf32>
    %cst_21 = arith.constant 1.000000e+00 : f32
    %23 = vector.broadcast %cst_21 : f32 to vector<1x256xf32>
    %24 = arith.addf %23, %22 : vector<1x256xf32>
    %25 = arith.divf %23, %24 : vector<1x256xf32>
    %26 = vector.extract_strided_slice %16 {offsets = [0, 0], sizes = [12, 256], strides = [1, 1]} : vector<24x256xf32> to vector<12x256xf32>
    %27 = vector.broadcast %25 : vector<1x256xf32> to vector<12x256xf32>
    %28 = arith.mulf %26, %27 : vector<12x256xf32>
    %c0_22 = arith.constant 0 : index
    %c0_23 = arith.constant 0 : index
    %c0_24 = arith.constant 0 : index
    %29 = vector.load %arg9[%c0_22, %c0_23, %c0_24] : memref<1x12x256xf32, #tpu.memory_space<vmem>>, vector<1x12x256xf32>
    %30 = vector.shape_cast %29 : vector<1x12x256xf32> to vector<12x256xf32>
    %31 = vector.shape_cast %28 : vector<12x256xf32> to vector<1x12x256xf32>
    tpu.vector_store %arg9[%c0_22, %c0_23, %c0_24], %31 {strides = array<i32>} : memref<1x12x256xf32, #tpu.memory_space<vmem>>, vector<1x12x256xf32>,
    return
  }
  func.func @transform_0(%arg0: i32, %arg1: i32) -> (i32, i32, i32) {
    %c0_i32 = arith.constant 0 : i32
    %c0_i32_0 = arith.constant 0 : i32
    return %arg0, %c0_i32, %arg1 : i32, i32, i32
  }
  func.func @transform_1(%arg0: i32, %arg1: i32) -> (i32, i32, i32) {
    %c0_i32 = arith.constant 0 : i32
    %c0_i32_0 = arith.constant 0 : i32
    return %arg0, %c0_i32, %arg1 : i32, i32, i32
  }
  func.func @transform_2(%arg0: i32, %arg1: i32) -> (i32, i32, i32) {
    %c0_i32 = arith.constant 0 : i32
    %c0_i32_0 = arith.constant 0 : i32
    return %arg0, %c0_i32, %arg1 : i32, i32, i32
  }
  func.func @transform_3(%arg0: i32, %arg1: i32) -> (i32, i32, i32) {
    %c0_i32 = arith.constant 0 : i32
    %c0_i32_0 = arith.constant 0 : i32
    %c0_i32_1 = arith.constant 0 : i32
    return %arg0, %c0_i32, %c0_i32_0 : i32, i32, i32
  }
  func.func @transform_4(%arg0: i32, %arg1: i32) -> (i32, i32, i32) {
    %c0_i32 = arith.constant 0 : i32
    %c0_i32_0 = arith.constant 0 : i32
    %c0_i32_1 = arith.constant 0 : i32
    return %arg0, %c0_i32, %c0_i32_0 : i32, i32, i32
  }
  func.func @transform_5(%arg0: i32, %arg1: i32) -> (i32, i32, i32) {
    %c0_i32 = arith.constant 0 : i32
    %c0_i32_0 = arith.constant 0 : i32
    %c0_i32_1 = arith.constant 0 : i32
    return %arg0, %c0_i32, %c0_i32_0 : i32, i32, i32
  }
  func.func @transform_6(%arg0: i32, %arg1: i32) -> (i32, i32) {
    %c0_i32 = arith.constant 0 : i32
    %c0_i32_0 = arith.constant 0 : i32
    %c0_i32_1 = arith.constant 0 : i32
    return %c0_i32, %c0_i32_0 : i32, i32
  }
  func.func @transform_7(%arg0: i32, %arg1: i32) -> (i32, i32, i32) {
    %c0_i32 = arith.constant 0 : i32
    %c0_i32_0 = arith.constant 0 : i32
    return %arg0, %c0_i32, %arg1 : i32, i32, i32
  }
}

</mosaic_0001>

<llo_original>
// kernel: tpu_custom_call.1
$region0: #{tpu_custom_call.1}
  #allocation0 [shape = 'u32[]', space=smem, size = 0x4, offset = 0x4, fixed_abs, tag = 'smem constant byte address 0x4 - core index']
  #allocation1 [shape = 'u32[144,128]{1,0:T(1,128)}', space=vmem, size = 0x12000, scoped, tag = 'internal scratch']
  #allocation2 [shape = 'f32[1,1]{1,0:T(1,128)S(6)}', space=smem, size = 0x200, scoped, tag = 'scoped memory for tpu_custom_call.1']
  %s0 = inlined_call_operand.vmem [shape: bf16[2,4,256], index: 0, kind: input, shape index: {}]
  %s1 = inlined_call_operand.vmem [shape: bf16[2,4,256], index: 1, kind: input, shape index: {}]
  %s2 = inlined_call_operand.vmem [shape: bf16[2,4,256], index: 2, kind: input, shape index: {}]
  %s3 = inlined_call_operand.vmem [shape: bf16[2,24,4], index: 3, kind: input, shape index: {}]
  %s4 = inlined_call_operand.vmem [shape: bf16[2,24,4], index: 4, kind: input, shape index: {}]
  %s5 = inlined_call_operand.vmem [shape: bf16[2,24,4], index: 5, kind: input, shape index: {}]
  %s6 = inlined_call_operand.<no memory space> [shape: f32[1,1], index: 6, kind: input, shape index: {}]
  %s7 = inlined_call_operand.vmem [shape: f32[2,12,256], index: 7, kind: output, shape index: {}]
  %s8 = sld [smem:[#allocation0]]
  $region61: #{tpu_custom_call.1} parent=0
    _
  %s10 = ssub.s32 1, %s8
  %s11 = scalar_select 0, %s10, %s8
  %12 = sst [smem:[#allocation2]] %s6
  loop: start=0, step=1, limit=4
  $region2: #{tpu_custom_call.1} parent=0 // loop_pre_header
    _
  $region3: #{tpu_custom_call.1} parent=0 // loop_header
    %s14 = sphi 0, %s18
    %p15 = scmp.ge.s32.totalorder %s14, 4
    %s21 = sphi 0, %s33
    %s22 = sphi 0, %s29
    %s23 = sphi 0, %s21
    %s24 = sphi 0, %s22
    %s25 = sphi 0, %s23
    %s26 = sphi 0, %s24
    %s38 = sphi 0, %s40
    %s41 = sphi 0, %s38
    %s42 = sphi 0, %s41
    %s58 = sphi 0, %s42
    %s66 = sphi 0, %s68
    %s69 = sphi 0, %s66
    %s70 = sphi 0, %s69
    %s86 = sphi 0, %s70
    %s94 = sphi 0, %s96
    %s97 = sphi 0, %s94
    %s98 = sphi 0, %s97
    %s114 = sphi 0, %s98
    %s120 = sphi 0, %s122
    %s123 = sphi 0, %s120
    %s124 = sphi 0, %s123
    %s140 = sphi 0, %s124
    %s146 = sphi 0, %s148
    %s149 = sphi 0, %s146
    %s150 = sphi 0, %s149
    %s166 = sphi 0, %s150
    %s172 = sphi 0, %s174
    %s175 = sphi 0, %s172
    %s176 = sphi 0, %s175
    %s192 = sphi 0, %s176
    %s196 = sphi 0, %s196
    %s198 = sphi 0, %s196
    %s199 = sphi 0, %s198
    %s213 = sphi 0, %s199
    %s221 = sphi 0, %s223
    %s224 = sphi 0, %s221
    %s225 = sphi 0, %s224
    %s241 = sphi 0, %s225
  $region4: #{tpu_custom_call.1} parent=0 // loop_header_branch
    %17 = sbr.rel (%p15) target = $region8
  $region5: #{tpu_custom_call.1} parent=0 // loop_body
    %s19 = ssub.s32 %s14, 1
    %s20 = ssub.s32 %s14, 2
    %s27 = sadd.s32 1, %s22
    %p28 = scmp.ge.s32.totalorder %s27, 1
    %s29 = scalar_select %p28, 0, %s27
    %s30 = sadd.s32 1, %s21
    %s31 = scalar_select %p28, %s30, %s21
    %p32 = scmp.ge.s32.totalorder %s31, 2
    %s33 = scalar_select %p32, 0, %s31
    %s34 = ssub.s32 %s21, %s33
    %s35 = ssub.s32 %s22, %s29
    %s36 = sor.u32 %s34, %s35
    %p37 = scmp.eq.s32.totalorder %s36, 0
    %s39 = sadd.s32 %s38, 1
    %s40 = scalar_select %p37, %s38, %s39
    %p43 = pneg %p37
    %p44 = scmp.eq.s32.totalorder %s14, 1
    %p45 = por %p43, %p44
    %p46 = scmp.ne.s32.totalorder %s38, %s41
    %p47 = scmp.eq.s32.totalorder %s14, 0
    %p48 = por %p46, %p47
    %p49 = scmp.ne.s32.totalorder %s38, %s41
    %p50 = scmp.eq.s32.totalorder %s19, 1
    %p51 = por %p49, %p50
    %p52 = scmp.ne.s32.totalorder %s41, %s42
    %p53 = scmp.eq.s32.totalorder %s19, 0
    %p54 = por %p52, %p53
    %p55 = scmp.ne.s32.totalorder %s41, %s42
    %p56 = scmp.eq.s32.totalorder %s20, 1
    %p57 = por %p55, %p56
    %p59 = scmp.ne.s32.totalorder %s42, %s58
    %p60 = scmp.eq.s32.totalorder %s20, 0
    %p61 = por %p59, %p60
    %s62 = ssub.s32 %s21, %s33
    %s63 = ssub.s32 %s22, %s29
    %s64 = sor.u32 %s62, %s63
    %p65 = scmp.eq.s32.totalorder %s64, 0
    %s67 = sadd.s32 %s66, 1
    %s68 = scalar_select %p65, %s66, %s67
    %p71 = pneg %p65
    %p72 = scmp.eq.s32.totalorder %s14, 1
    %p73 = por %p71, %p72
    %p74 = scmp.ne.s32.totalorder %s66, %s69
    %p75 = scmp.eq.s32.totalorder %s14, 0
    %p76 = por %p74, %p75
    %p77 = scmp.ne.s32.totalorder %s66, %s69
    %p78 = scmp.eq.s32.totalorder %s19, 1
    %p79 = por %p77, %p78
    %p80 = scmp.ne.s32.totalorder %s69, %s70
    %p81 = scmp.eq.s32.totalorder %s19, 0
    %p82 = por %p80, %p81
    %p83 = scmp.ne.s32.totalorder %s69, %s70
    %p84 = scmp.eq.s32.totalorder %s20, 1
    %p85 = por %p83, %p84
    %p87 = scmp.ne.s32.totalorder %s70, %s86
    %p88 = scmp.eq.s32.totalorder %s20, 0
    %p89 = por %p87, %p88
    %s90 = ssub.s32 %s21, %s33
    %s91 = ssub.s32 %s22, %s29
    %s92 = sor.u32 %s90, %s91
    %p93 = scmp.eq.s32.totalorder %s92, 0
    %s95 = sadd.s32 %s94, 1
    %s96 = scalar_select %p93, %s94, %s95
    %p99 = pneg %p93
    %p100 = scmp.eq.s32.totalorder %s14, 1
    %p101 = por %p99, %p100
    %p102 = scmp.ne.s32.totalorder %s94, %s97
    %p103 = scmp.eq.s32.totalorder %s14, 0
    %p104 = por %p102, %p103
    %p105 = scmp.ne.s32.totalorder %s94, %s97
    %p106 = scmp.eq.s32.totalorder %s19, 1
    %p107 = por %p105, %p106
    %p108 = scmp.ne.s32.totalorder %s97, %s98
    %p109 = scmp.eq.s32.totalorder %s19, 0
    %p110 = por %p108, %p109
    %p111 = scmp.ne.s32.totalorder %s97, %s98
    %p112 = scmp.eq.s32.totalorder %s20, 1
    %p113 = por %p111, %p112
    %p115 = scmp.ne.s32.totalorder %s98, %s114
    %p116 = scmp.eq.s32.totalorder %s20, 0
    %p117 = por %p115, %p116
    %s118 = ssub.s32 %s21, %s33
    %p119 = scmp.eq.s32.totalorder %s118, 0
    %s121 = sadd.s32 %s120, 1
    %s122 = scalar_select %p119, %s120, %s121
    %p125 = pneg %p119
    %p126 = scmp.eq.s32.totalorder %s14, 1
    %p127 = por %p125, %p126
    %p128 = scmp.ne.s32.totalorder %s120, %s123
    %p129 = scmp.eq.s32.totalorder %s14, 0
    %p130 = por %p128, %p129
    %p131 = scmp.ne.s32.totalorder %s120, %s123
    %p132 = scmp.eq.s32.totalorder %s19, 1
    %p133 = por %p131, %p132
    %p134 = scmp.ne.s32.totalorder %s123, %s124
    %p135 = scmp.eq.s32.totalorder %s19, 0
    %p136 = por %p134, %p135
    %p137 = scmp.ne.s32.totalorder %s123, %s124
    %p138 = scmp.eq.s32.totalorder %s20, 1
    %p139 = por %p137, %p138
    %p141 = scmp.ne.s32.totalorder %s124, %s140
    %p142 = scmp.eq.s32.totalorder %s20, 0
    %p143 = por %p141, %p142
    %s144 = ssub.s32 %s21, %s33
    %p145 = scmp.eq.s32.totalorder %s144, 0
    %s147 = sadd.s32 %s146, 1
    %s148 = scalar_select %p145, %s146, %s147
    %p151 = pneg %p145
    %p152 = scmp.eq.s32.totalorder %s14, 1
    %p153 = por %p151, %p152
    %p154 = scmp.ne.s32.totalorder %s146, %s149
    %p155 = scmp.eq.s32.totalorder %s14, 0
    %p156 = por %p154, %p155
    %p157 = scmp.ne.s32.totalorder %s146, %s149
    %p158 = scmp.eq.s32.totalorder %s19, 1
    %p159 = por %p157, %p158
    %p160 = scmp.ne.s32.totalorder %s149, %s150
    %p161 = scmp.eq.s32.totalorder %s19, 0
    %p162 = por %p160, %p161
    %p163 = scmp.ne.s32.totalorder %s149, %s150
    %p164 = scmp.eq.s32.totalorder %s20, 1
    %p165 = por %p163, %p164
    %p167 = scmp.ne.s32.totalorder %s150, %s166
    %p168 = scmp.eq.s32.totalorder %s20, 0
    %p169 = por %p167, %p168
    %s170 = ssub.s32 %s21, %s33
    %p171 = scmp.eq.s32.totalorder %s170, 0
    %s173 = sadd.s32 %s172, 1
    %s174 = scalar_select %p171, %s172, %s173
    %p177 = pneg %p171
    %p178 = scmp.eq.s32.totalorder %s14, 1
    %p179 = por %p177, %p178
    %p180 = scmp.ne.s32.totalorder %s172, %s175
    %p181 = scmp.eq.s32.totalorder %s14, 0
    %p182 = por %p180, %p181
    %p183 = scmp.ne.s32.totalorder %s172, %s175
    %p184 = scmp.eq.s32.totalorder %s19, 1
    %p185 = por %p183, %p184
    %p186 = scmp.ne.s32.totalorder %s175, %s176
    %p187 = scmp.eq.s32.totalorder %s19, 0
    %p188 = por %p186, %p187
    %p189 = scmp.ne.s32.totalorder %s175, %s176
    %p190 = scmp.eq.s32.totalorder %s20, 1
    %p191 = por %p189, %p190
    %p193 = scmp.ne.s32.totalorder %s176, %s192
    %p194 = scmp.eq.s32.totalorder %s20, 0
    %p195 = por %p193, %p194
    %s197 = sadd.s32 %s196, 1
    %p200 = scmp.eq.s32.totalorder %s14, 1
    %p201 = scmp.ne.s32.totalorder %s196, %s198
    %p202 = scmp.eq.s32.totalorder %s14, 0
    %p203 = por %p201, %p202
    %p204 = scmp.ne.s32.totalorder %s196, %s198
    %p205 = scmp.eq.s32.totalorder %s19, 1
    %p206 = por %p204, %p205
    %p207 = scmp.ne.s32.totalorder %s198, %s199
    %p208 = scmp.eq.s32.totalorder %s19, 0
    %p209 = por %p207, %p208
    %p210 = scmp.ne.s32.totalorder %s198, %s199
    %p211 = scmp.eq.s32.totalorder %s20, 1
    %p212 = por %p210, %p211
    %p214 = scmp.ne.s32.totalorder %s199, %s213
    %p215 = scmp.eq.s32.totalorder %s20, 0
    %p216 = por %p214, %p215
    %s217 = ssub.s32 %s21, %s33
    %s218 = ssub.s32 %s22, %s29
    %s219 = sor.u32 %s217, %s218
    %p220 = scmp.eq.s32.totalorder %s219, 0
    %s222 = sadd.s32 %s221, 1
    %s223 = scalar_select %p220, %s221, %s222
    %p226 = pneg %p220
    %p227 = scmp.eq.s32.totalorder %s14, 1
    %p228 = por %p226, %p227
    %p229 = scmp.ne.s32.totalorder %s221, %s224
    %p230 = scmp.eq.s32.totalorder %s14, 0
    %p231 = por %p229, %p230
    %p232 = scmp.ne.s32.totalorder %s221, %s224
    %p233 = scmp.eq.s32.totalorder %s19, 1
    %p234 = por %p232, %p233
    %p235 = scmp.ne.s32.totalorder %s224, %s225
    %p236 = scmp.eq.s32.totalorder %s19, 0
    %p237 = por %p235, %p236
    %p238 = scmp.ne.s32.totalorder %s224, %s225
    %p239 = scmp.eq.s32.totalorder %s20, 1
    %p240 = por %p238, %p239
    %p242 = scmp.ne.s32.totalorder %s225, %s241
    %p243 = scmp.eq.s32.totalorder %s20, 0
    %p244 = por %p242, %p243
    %p245 = scmp.le.s32.totalorder 1, %s14
    %p246 = scmp.lt.s32.totalorder %s14, 3
    %p247 = pnand %p245, %p246
    %p248 = pneg %p247
    // Predicated region
    $region9: #{tpu_custom_call.1} parent=5 // pred_check
      _
    $region10: #{tpu_custom_call.1} parent=5 // pred_check_branch
      %250 = sbr.rel (%p247) target = $region12
    $region11: #{tpu_custom_call.1} parent=5 // pred_region
      %s251 = ssub.s32 %s14, 1
      // Predicated region
      $region13: #{tpu_custom_call.1} parent=11 // pred_check
        %p252 = pneg %p209
      $region14: #{tpu_custom_call.1} parent=11 // pred_check_branch
        %254 = sbr.rel (%p252) target = $region16
      $region15: #{tpu_custom_call.1} parent=11 // pred_region
        _
      $region16: #{tpu_custom_call.1} parent=11 // pred_fallthru
        _
    $region12: #{tpu_custom_call.1} parent=5 // pred_fallthru
      _
    %p255 = scmp.lt.s32.totalorder %s14, 2
    // Predicated region
    $region17: #{tpu_custom_call.1} parent=5 // pred_check
      %p256 = pneg %p255
    $region18: #{tpu_custom_call.1} parent=5 // pred_check_branch
      %258 = sbr.rel (%p256) target = $region20
    $region19: #{tpu_custom_call.1} parent=5 // pred_region
      // Predicated region
      $region21: #{tpu_custom_call.1} parent=19 // pred_check
        %p259 = pneg %p48
      $region22: #{tpu_custom_call.1} parent=19 // pred_check_branch
        %261 = sbr.rel (%p259) target = $region24
      $region23: #{tpu_custom_call.1} parent=19 // pred_region
        %s262 = smul.u32 2, %s22
        %p263 = scmp.lt.s32.totalorder %s21, 1
        %s264 = scalar_select %p263, %s21, 1
        %p265 = scmp.lt.s32.totalorder %s262, 1
        %s266 = scalar_select %p265, %s262, 1
        %s267 = smul.addr %s264, 2
        %s268 = sadd.s32 %s266, %s267
        %s269 = smul.addr %s268, 2
        %s270 = scalar_lea.vmem %s0, %s269
        %s271 = smul.u32 2, %s22
      $region24: #{tpu_custom_call.1} parent=19 // pred_fallthru
        _
      // Predicated region
      $region25: #{tpu_custom_call.1} parent=19 // pred_check
        %p272 = pneg %p76
      $region26: #{tpu_custom_call.1} parent=19 // pred_check_branch
        %274 = sbr.rel (%p272) target = $region28
      $region27: #{tpu_custom_call.1} parent=19 // pred_region
        %s275 = smul.u32 2, %s22
        %p276 = scmp.lt.s32.totalorder %s21, 1
        %s277 = scalar_select %p276, %s21, 1
        %p278 = scmp.lt.s32.totalorder %s275, 1
        %s279 = scalar_select %p278, %s275, 1
        %s280 = smul.addr %s277, 2
        %s281 = sadd.s32 %s279, %s280
        %s282 = smul.addr %s281, 2
        %s283 = scalar_lea.vmem %s1, %s282
        %s284 = smul.u32 2, %s22
      $region28: #{tpu_custom_call.1} parent=19 // pred_fallthru
        _
      // Predicated region
      $region29: #{tpu_custom_call.1} parent=19 // pred_check
        %p285 = pneg %p104
      $region30: #{tpu_custom_call.1} parent=19 // pred_check_branch
        %287 = sbr.rel (%p285) target = $region32
      $region31: #{tpu_custom_call.1} parent=19 // pred_region
        %s288 = smul.u32 2, %s22
        %p289 = scmp.lt.s32.totalorder %s21, 1
        %s290 = scalar_select %p289, %s21, 1
        %p291 = scmp.lt.s32.totalorder %s288, 1
        %s292 = scalar_select %p291, %s288, 1
        %s293 = smul.addr %s290, 2
        %s294 = sadd.s32 %s292, %s293
        %s295 = smul.addr %s294, 2
        %s296 = scalar_lea.vmem %s2, %s295
        %s297 = smul.u32 2, %s22
      $region32: #{tpu_custom_call.1} parent=19 // pred_fallthru
        _
      // Predicated region
      $region33: #{tpu_custom_call.1} parent=19 // pred_check
        %p298 = pneg %p130
      $region34: #{tpu_custom_call.1} parent=19 // pred_check_branch
        %300 = sbr.rel (%p298) target = $region36
      $region35: #{tpu_custom_call.1} parent=19 // pred_region
        %p301 = scmp.lt.s32.totalorder %s21, 1
        %s302 = scalar_select %p301, %s21, 1
        %s303 = smul.addr %s302, 3
        %s304 = smul.addr %s303, 4
        %s305 = scalar_lea.vmem %s3, %s304
      $region36: #{tpu_custom_call.1} parent=19 // pred_fallthru
        _
      // Predicated region
      $region37: #{tpu_custom_call.1} parent=19 // pred_check
        %p306 = pneg %p156
      $region38: #{tpu_custom_call.1} parent=19 // pred_check_branch
        %308 = sbr.rel (%p306) target = $region40
      $region39: #{tpu_custom_call.1} parent=19 // pred_region
        %p309 = scmp.lt.s32.totalorder %s21, 1
        %s310 = scalar_select %p309, %s21, 1
        %s311 = smul.addr %s310, 3
        %s312 = smul.addr %s311, 4
        %s313 = scalar_lea.vmem %s4, %s312
      $region40: #{tpu_custom_call.1} parent=19 // pred_fallthru
        _
      // Predicated region
      $region41: #{tpu_custom_call.1} parent=19 // pred_check
        %p314 = pneg %p182
      $region42: #{tpu_custom_call.1} parent=19 // pred_check_branch
        %316 = sbr.rel (%p314) target = $region44
      $region43: #{tpu_custom_call.1} parent=19 // pred_region
        %p317 = scmp.lt.s32.totalorder %s21, 1
        %s318 = scalar_select %p317, %s21, 1
        %s319 = smul.addr %s318, 3
        %s320 = smul.addr %s319, 4
        %s321 = scalar_lea.vmem %s5, %s320
      $region44: #{tpu_custom_call.1} parent=19 // pred_fallthru
        _
    $region20: #{tpu_custom_call.1} parent=5 // pred_fallthru
      _
    %p322 = scmp.le.s32.totalorder 1, %s14
    %p323 = scmp.lt.s32.totalorder %s14, 3
    %p324 = pnand %p322, %p323
    %p325 = pneg %p324
    // Predicated region
    $region45: #{tpu_custom_call.1} parent=5 // pred_check
      _
    $region46: #{tpu_custom_call.1} parent=5 // pred_check_branch
      %327 = sbr.rel (%p324) target = $region48
    $region47: #{tpu_custom_call.1} parent=5 // pred_region
      %s328 = ssub.s32 %s14, 1
      %s329 = smul.u32 2, %s24
      %p330 = scmp.lt.s32.totalorder %s23, 1
      %s331 = scalar_select %p330, %s23, 1
      %p332 = scmp.lt.s32.totalorder %s329, 1
      %s333 = scalar_select %p332, %s329, 1
      %s334 = smul.addr %s331, 2
      %s335 = sadd.s32 %s333, %s334
      %s336 = smul.addr %s335, 2
      %s337 = scalar_lea.vmem %s0, %s336
      %p338 = pneg %p54
      %p339 = pneg %p51
      %s340 = smul.u32 2, %s24
      %p341 = scmp.lt.s32.totalorder %s23, 1
      %s342 = scalar_select %p341, %s23, 1
      %p343 = scmp.lt.s32.totalorder %s340, 1
      %s344 = scalar_select %p343, %s340, 1
      %s345 = smul.addr %s342, 2
      %s346 = sadd.s32 %s344, %s345
      %s347 = smul.addr %s346, 2
      %s348 = scalar_lea.vmem %s1, %s347
      %p349 = pneg %p82
      %p350 = pneg %p79
      %s351 = smul.u32 2, %s24
      %p352 = scmp.lt.s32.totalorder %s23, 1
      %s353 = scalar_select %p352, %s23, 1
      %p354 = scmp.lt.s32.totalorder %s351, 1
      %s355 = scalar_select %p354, %s351, 1
      %s356 = smul.addr %s353, 2
      %s357 = sadd.s32 %s355, %s356
      %s358 = smul.addr %s357, 2
      %s359 = scalar_lea.vmem %s2, %s358
      %p360 = pneg %p110
      %p361 = pneg %p107
      %p362 = scmp.lt.s32.totalorder %s23, 1
      %s363 = scalar_select %p362, %s23, 1
      %s364 = smul.addr %s363, 3
      %s365 = smul.addr %s364, 4
      %s366 = scalar_lea.vmem %s3, %s365
      %p367 = pneg %p136
      %p368 = pneg %p133
      %p369 = scmp.lt.s32.totalorder %s23, 1
      %s370 = scalar_select %p369, %s23, 1
      %s371 = smul.addr %s370, 3
      %s372 = smul.addr %s371, 4
      %s373 = scalar_lea.vmem %s4, %s372
      %p374 = pneg %p162
      %p375 = pneg %p159
      %p376 = scmp.lt.s32.totalorder %s23, 1
      %s377 = scalar_select %p376, %s23, 1
      %s378 = smul.addr %s377, 3
      %s379 = smul.addr %s378, 4
      %s380 = scalar_lea.vmem %s5, %s379
      %p381 = pneg %p188
      %p382 = pneg %p185
      %p383 = pneg %p209
      %p384 = pneg %p206
      %p385 = pneg %p237
      %p386 = pneg %p234
      %s387 = smul.u32 2, %s24
      %p388 = scmp.lt.s32.totalorder %s23, 1
      %s389 = scalar_select %p388, %s23, 1
      %p390 = scmp.lt.s32.totalorder %s387, 1
      %s391 = scalar_select %p390, %s387, 1
      %s392 = smul.addr %s389, 4
      %s393 = sadd.s32 %s391, %s392
      %s394 = smul.addr %s393, 8
      %s395 = scalar_lea.vmem %s7, %s394
      %s396 = smul.u32 2, %s24
      %p397 = scmp.lt.s32.totalorder %s23, 1
      %s398 = scalar_select %p397, %s23, 1
      %p399 = scmp.lt.s32.totalorder %s396, 1
      %s400 = scalar_select %p399, %s396, 1
      %s401 = smul.addr %s398, 2
      %s402 = sadd.s32 %s400, %s401
      %s403 = smul.addr %s402, 2
      %s404 = scalar_lea.vmem %s0, %s403
      %s405 = smul.u32 2, %s24
      %s406 = smul.u32 2, %s24
      %p407 = scmp.lt.s32.totalorder %s23, 1
      %s408 = scalar_select %p407, %s23, 1
      %p409 = scmp.lt.s32.totalorder %s406, 1
      %s410 = scalar_select %p409, %s406, 1
      %s411 = smul.addr %s408, 2
      %s412 = sadd.s32 %s410, %s411
      %s413 = smul.addr %s412, 2
      %s414 = scalar_lea.vmem %s1, %s413
      %s415 = smul.u32 2, %s24
      %s416 = smul.u32 2, %s24
      %p417 = scmp.lt.s32.totalorder %s23, 1
      %s418 = scalar_select %p417, %s23, 1
      %p419 = scmp.lt.s32.totalorder %s416, 1
      %s420 = scalar_select %p419, %s416, 1
      %s421 = smul.addr %s418, 2
      %s422 = sadd.s32 %s420, %s421
      %s423 = smul.addr %s422, 2
      %s424 = scalar_lea.vmem %s2, %s423
      %s425 = smul.u32 2, %s24
      %p426 = scmp.lt.s32.totalorder %s23, 1
      %s427 = scalar_select %p426, %s23, 1
      %s428 = smul.addr %s427, 3
      %s429 = smul.addr %s428, 4
      %s430 = scalar_lea.vmem %s3, %s429
      %p431 = scmp.lt.s32.totalorder %s23, 1
      %s432 = scalar_select %p431, %s23, 1
      %s433 = smul.addr %s432, 3
      %s434 = smul.addr %s433, 4
      %s435 = scalar_lea.vmem %s4, %s434
      %p436 = scmp.lt.s32.totalorder %s23, 1
      %s437 = scalar_select %p436, %s23, 1
      %s438 = smul.addr %s437, 3
      %s439 = smul.addr %s438, 4
      %s440 = scalar_lea.vmem %s5, %s439
      %s441 = smul.u32 2, %s24
      %p442 = scmp.lt.s32.totalorder %s23, 1
      %s443 = scalar_select %p442, %s23, 1
      %p444 = scmp.lt.s32.totalorder %s441, 1
      %s445 = scalar_select %p444, %s441, 1
      %s446 = smul.addr %s443, 4
      %s447 = sadd.s32 %s445, %s446
      %s448 = smul.addr %s447, 8
      %s449 = scalar_lea.vmem %s7, %s448
      %s450 = smul.u32 2, %s24
      %v452 = vld [vmem:[%s430] sm:$0xf]
      %v453 = vld [vmem:[%s430 + $0x4] sm:$0xf]
      %v454 = vld [vmem:[%s430 + $0x8] sm:$0xf]
      %v455 = vld [vmem:[%s404] sm:$0xf]
      %v456 = vld [vmem:[%s435] sm:$0xf]
      %v457 = vld [vmem:[%s435 + $0x4] sm:$0xf]
      %v458 = vld [vmem:[%s435 + $0x8] sm:$0xf]
      %v459 = vld [vmem:[%s414] sm:$0xf]
      %v463 = vunpack.c.l.b16 %v456
      %v464 = vunpack.c.l.b16 %v457
      %v465 = vunpack.c.l.b16 %v458
      %v466 = vpack.c.b16 %v464, %v463
      %v467 = vpack.c.b16 %v465, %v465
      %v470 = vunpack.c.l.s4 1983009808
      %v471 = vunpack.c.0.s8 %v470
      %v472 = vlaneseq
      %v473 = vshrl.u32 %v472, 7
      %v474 = vsub.s32 %v471, %v473
      %v475 = vrot.slane %v459, %v474
      %v476 = vcombine.high %v475, %v475
      %vm477 = vcmask 31744
      %v479 = vsel %vm477, %v466, 0
      %v482 = vsel %vm477, %v467, 0
      %vm484 = vcmask 1041408
      %v486 = vsel %vm484, %v475, 0
      %v489 = vsel %vm484, %v476, 0
      %491 = vmatprep.subr.bf16.mxu0 %v489
      %492 = vmatpush1.bf16.msra.mxu0 %v486
      %493 = vmatprep.subr.bf16.mxu0 0
      %494 = vmatpush1.bf16.msra.mxu0 0
      %495 = vmatprep.subr.bf16.mxu0 0
      %496 = vmatpush1.bf16.msra.mxu0 0
      %497 = vmatprep.subr.bf16.mxu0 0
      %498 = vmatpush1.bf16.msra.mxu0 0
      %499 = vmatprep.subr.bf16.mxu0 0
      %500 = vmatpush1.bf16.msra.mxu0 0
      %501 = vmatprep.subr.bf16.mxu0 0
      %502 = vmatpush1.bf16.msra.mxu0 0
      %503 = vmatprep.subr.bf16.mxu0 0
      %504 = vmatpush1.bf16.msra.mxu0 0
      %505 = vmatprep.subr.bf16.mxu0 0
      %506 = vmatpush1.bf16.msra.mxu0 0
      %507 = vmatprep.subr.bf16.mxu0 0
      %508 = vmatpush1.bf16.msra.mxu0 0
      %509 = vmatprep.subr.bf16.mxu0 0
      %510 = vmatpush1.bf16.msra.mxu0 0
      %511 = vmatprep.subr.bf16.mxu0 0
      %512 = vmatpush1.bf16.msra.mxu0 0
      %513 = vmatprep.subr.bf16.mxu0 0
      %514 = vmatpush1.bf16.msra.mxu0 0
      %515 = vmatprep.subr.bf16.mxu0 0
      %516 = vmatpush1.bf16.msra.mxu0 0
      %517 = vmatprep.subr.bf16.mxu0 0
      %518 = vmatpush1.bf16.msra.mxu0 0
      %519 = vmatprep.subr.bf16.mxu0 0
      %520 = vmatpush1.bf16.msra.mxu0 0
      %521 = vmatprep.subr.bf16.mxu0 0
      %522 = vmatpush1.bf16.msra.mxu0 0
      %523 = vmatprep.mubr.bf16.mxu0 0
      %524 = vmatmul.mubr.bf16.gmra.mrb[0].mxu0 %v479
      %v525 = vpop.f32.mrb[0].mxu0
      %v526 = vadd.f32 0.0, %v525
      %v527 = vpop.f32.mrb[0].mxu0
      %v528 = vadd.f32 0.0, %v527
      %v529 = vpop.f32.mrb[0].mxu0
      %v530 = vadd.f32 0.0, %v529
      %v531 = vpop.f32.mrb[0].mxu0
      %v532 = vadd.f32 0.0, %v531
      %533 = vmatprep.mubr.bf16.mxu0 0
      %534 = vmatmul.mubr.bf16.gmra.mrb[0].mxu0 %v482
      %v535 = vpop.f32.mrb[0].mxu0
      %v536 = vadd.f32 0.0, %v535
      %v537 = vpop.f32.mrb[0].mxu0
      %v538 = vadd.f32 0.0, %v537
      %v539 = vpop.f32.mrb[0].mxu0
      %v540 = vpop.f32.mrb[0].mxu0
      %541 = vdwg.mxu0
      %v545 = vunpack.c.l.b16 %v452
      %v546 = vunpack.c.l.b16 %v453
      %v547 = vunpack.c.l.b16 %v454
      %v548 = vpack.c.b16 %v546, %v545
      %v549 = vpack.c.b16 %v547, %v547
      %v552 = vunpack.c.l.s4 1983009808
      %v553 = vunpack.c.0.s8 %v552
      %v554 = vlaneseq
      %v555 = vshrl.u32 %v554, 7
      %v556 = vsub.s32 %v553, %v555
      %v557 = vrot.slane %v455, %v556
      %v558 = vcombine.high %v557, %v557
      %v560 = vsel %vm477, %v548, 0
      %v563 = vsel %vm477, %v549, 0
      %v566 = vsel %vm484, %v557, 0
      %v569 = vsel %vm484, %v558, 0
      %571 = vmatprep.subr.bf16.mxu0 %v569
      %572 = vmatpush1.bf16.msra.mxu0 %v566
      %573 = vmatprep.subr.bf16.mxu0 0
      %574 = vmatpush1.bf16.msra.mxu0 0
      %575 = vmatprep.subr.bf16.mxu0 0
      %576 = vmatpush1.bf16.msra.mxu0 0
      %577 = vmatprep.subr.bf16.mxu0 0
      %578 = vmatpush1.bf16.msra.mxu0 0
      %579 = vmatprep.subr.bf16.mxu0 0
      %580 = vmatpush1.bf16.msra.mxu0 0
      %581 = vmatprep.subr.bf16.mxu0 0
      %582 = vmatpush1.bf16.msra.mxu0 0
      %583 = vmatprep.subr.bf16.mxu0 0
      %584 = vmatpush1.bf16.msra.mxu0 0
      %585 = vmatprep.subr.bf16.mxu0 0
      %586 = vmatpush1.bf16.msra.mxu0 0
      %587 = vmatprep.subr.bf16.mxu0 0
      %588 = vmatpush1.bf16.msra.mxu0 0
      %589 = vmatprep.subr.bf16.mxu0 0
      %590 = vmatpush1.bf16.msra.mxu0 0
      %591 = vmatprep.subr.bf16.mxu0 0
      %592 = vmatpush1.bf16.msra.mxu0 0
      %593 = vmatprep.subr.bf16.mxu0 0
      %594 = vmatpush1.bf16.msra.mxu0 0
      %595 = vmatprep.subr.bf16.mxu0 0
      %596 = vmatpush1.bf16.msra.mxu0 0
      %597 = vmatprep.subr.bf16.mxu0 0
      %598 = vmatpush1.bf16.msra.mxu0 0
      %599 = vmatprep.subr.bf16.mxu0 0
      %600 = vmatpush1.bf16.msra.mxu0 0
      %601 = vmatprep.subr.bf16.mxu0 0
      %602 = vmatpush1.bf16.msra.mxu0 0
      %603 = vmatprep.mubr.bf16.mxu0 0
      %604 = vmatmul.mubr.bf16.gmra.mrb[0].mxu0 %v560
      %v605 = vpop.f32.mrb[0].mxu0
      %v606 = vadd.f32 %v526, %v605
      %v607 = vpop.f32.mrb[0].mxu0
      %v608 = vadd.f32 %v528, %v607
      %v609 = vpop.f32.mrb[0].mxu0
      %v610 = vadd.f32 %v530, %v609
      %v611 = vpop.f32.mrb[0].mxu0
      %v612 = vadd.f32 %v532, %v611
      %613 = vmatprep.mubr.bf16.mxu0 0
      %614 = vmatmul.mubr.bf16.gmra.mrb[0].mxu0 %v563
      %v615 = vpop.f32.mrb[0].mxu0
      %v616 = vadd.f32 %v536, %v615
      %v617 = vpop.f32.mrb[0].mxu0
      %v618 = vadd.f32 %v538, %v617
      %v619 = vpop.f32.mrb[0].mxu0
      %v620 = vpop.f32.mrb[0].mxu0
      %621 = vdwg.mxu0
      %v622 = vld [vmem:[%s440] sm:$0xf]
      %v623 = vld [vmem:[%s440 + $0x4] sm:$0xf]
      %v624 = vld [vmem:[%s440 + $0x8] sm:$0xf]
      %v625 = vld [vmem:[%s424] sm:$0xf]
      %v629 = vunpack.c.l.b16 %v622
      %v630 = vunpack.c.l.b16 %v623
      %v631 = vunpack.c.l.b16 %v624
      %v632 = vpack.c.b16 %v630, %v629
      %v633 = vpack.c.b16 %v631, %v631
      %v636 = vunpack.c.l.s4 1983009808
      %v637 = vunpack.c.0.s8 %v636
      %v638 = vlaneseq
      %v639 = vshrl.u32 %v638, 7
      %v640 = vsub.s32 %v637, %v639
      %v641 = vrot.slane %v625, %v640
      %v642 = vcombine.high %v641, %v641
      %v644 = vsel %vm477, %v632, 0
      %v647 = vsel %vm477, %v633, 0
      %v650 = vsel %vm484, %v641, 0
      %v653 = vsel %vm484, %v642, 0
      %655 = vmatprep.subr.bf16.mxu0 %v653
      %656 = vmatpush1.bf16.msra.mxu0 %v650
      %657 = vmatprep.subr.bf16.mxu0 0
      %658 = vmatpush1.bf16.msra.mxu0 0
      %659 = vmatprep.subr.bf16.mxu0 0
      %660 = vmatpush1.bf16.msra.mxu0 0
      %661 = vmatprep.subr.bf16.mxu0 0
      %662 = vmatpush1.bf16.msra.mxu0 0
      %663 = vmatprep.subr.bf16.mxu0 0
      %664 = vmatpush1.bf16.msra.mxu0 0
      %665 = vmatprep.subr.bf16.mxu0 0
      %666 = vmatpush1.bf16.msra.mxu0 0
      %667 = vmatprep.subr.bf16.mxu0 0
      %668 = vmatpush1.bf16.msra.mxu0 0
      %669 = vmatprep.subr.bf16.mxu0 0
      %670 = vmatpush1.bf16.msra.mxu0 0
      %671 = vmatprep.subr.bf16.mxu0 0
      %672 = vmatpush1.bf16.msra.mxu0 0
      %673 = vmatprep.subr.bf16.mxu0 0
      %674 = vmatpush1.bf16.msra.mxu0 0
      %675 = vmatprep.subr.bf16.mxu0 0
      %676 = vmatpush1.bf16.msra.mxu0 0
      %677 = vmatprep.subr.bf16.mxu0 0
      %678 = vmatpush1.bf16.msra.mxu0 0
      %679 = vmatprep.subr.bf16.mxu0 0
      %680 = vmatpush1.bf16.msra.mxu0 0
      %681 = vmatprep.subr.bf16.mxu0 0
      %682 = vmatpush1.bf16.msra.mxu0 0
      %683 = vmatprep.subr.bf16.mxu0 0
      %684 = vmatpush1.bf16.msra.mxu0 0
      %685 = vmatprep.subr.bf16.mxu0 0
      %686 = vmatpush1.bf16.msra.mxu0 0
      %687 = vmatprep.mubr.bf16.mxu0 0
      %688 = vmatmul.mubr.bf16.gmra.mrb[0].mxu0 %v644
      %v689 = vpop.f32.mrb[0].mxu0
      %v690 = vadd.f32 0.0, %v689
      %v691 = vpop.f32.mrb[0].mxu0
      %v692 = vadd.f32 0.0, %v691
      %v693 = vpop.f32.mrb[0].mxu0
      %v694 = vadd.f32 0.0, %v693
      %v695 = vpop.f32.mrb[0].mxu0
      %v696 = vadd.f32 0.0, %v695
      %697 = vmatprep.mubr.bf16.mxu0 0
      %698 = vmatmul.mubr.bf16.gmra.mrb[0].mxu0 %v647
      %v699 = vpop.f32.mrb[0].mxu0
      %v700 = vadd.f32 0.0, %v699
      %v701 = vpop.f32.mrb[0].mxu0
      %v702 = vadd.f32 0.0, %v701
      %v703 = vpop.f32.mrb[0].mxu0
      %v704 = vpop.f32.mrb[0].mxu0
      %705 = vdwg.mxu0
      %v706 = vadd.f32 %v606, %v690
      %v707 = vadd.f32 %v608, %v692
      %v708 = vadd.f32 %v610, %v694
      %v709 = vadd.f32 %v612, %v696
      %v710 = vadd.f32 %v616, %v700
      %v711 = vadd.f32 %v618, %v702
      %s712 = sld [smem:[#allocation2]]
      %v713 = vstv %s712
      %v714 = vadd.f32 %v710, %v713
      %v715 = vadd.f32 %v711, %v713
      %v716 = vxor.u32 %v714, 2147483648
      %v717 = vxor.u32 %v715, 2147483648
      %v718 = vmul.f32 %v716, 1.442695
      %v719 = vpow.pop %v718
      %v720 = vmul.f32 %v717, 1.442695
      %v721 = vpow.pop %v720
      %v722 = vadd.f32 %v719, 1.0
      %v723 = vadd.f32 %v721, 1.0
      %v724 = vrcp.pop %v722
      %v725 = vmul.f32 1.0, %v724
      %v726 = vrcp.pop %v723
      %v727 = vmul.f32 1.0, %v726
      %v728 = vlaneseq
      %v729 = vshrl.u32 %v728, 7
      %v730 = vsub.s32 0, %v729
      %v731 = vrot.slane %v725, %v730
      %v732 = vlaneseq
      %v733 = vshrl.u32 %v732, 7
      %v734 = vsub.s32 0, %v733
      %v735 = vrot.slane %v727, %v734
      %v736 = vmul.f32 %v706, %v731
      %v737 = vmul.f32 %v707, %v735
      %v738 = vmul.f32 %v708, %v731
      %v739 = vmul.f32 %v709, %v735
      %740 = vst [vmem:[%s449] sm:$0xff] %v736
      %741 = vst [vmem:[%s449 + $0x8] sm:$0xff] %v737
      %742 = vst [vmem:[%s449 + $0x10] sm:$0xf] %v738
      %743 = vst [vmem:[%s449 + $0x18] sm:$0xf] %v739
      %s744 = smul.u32 2, %s24
      %p745 = scmp.lt.s32.totalorder %s23, 1
      %s746 = scalar_select %p745, %s23, 1
      %p747 = scmp.lt.s32.totalorder %s744, 1
      %s748 = scalar_select %p747, %s744, 1
      %s749 = smul.addr %s746, 4
      %s750 = sadd.s32 %s748, %s749
      %s751 = smul.addr %s750, 8
      %s752 = scalar_lea.vmem %s7, %s751
      // Predicated region
      $region49: #{tpu_custom_call.1} parent=47 // pred_check
        %p753 = pneg %p234
      $region50: #{tpu_custom_call.1} parent=47 // pred_check_branch
        %755 = sbr.rel (%p753) target = $region52
      $region51: #{tpu_custom_call.1} parent=47 // pred_region
        %s756 = smul.u32 2, %s24
      $region52: #{tpu_custom_call.1} parent=47 // pred_fallthru
        _
    $region48: #{tpu_custom_call.1} parent=5 // pred_fallthru
      _
    %p757 = scmp.le.s32.totalorder 2, %s14
    // Predicated region
    $region53: #{tpu_custom_call.1} parent=5 // pred_check
      %p758 = pneg %p757
    $region54: #{tpu_custom_call.1} parent=5 // pred_check_branch
      %760 = sbr.rel (%p758) target = $region56
    $region55: #{tpu_custom_call.1} parent=5 // pred_region
      %s761 = ssub.s32 %s14, 2
      // Predicated region
      $region57: #{tpu_custom_call.1} parent=55 // pred_check
        %p762 = pneg %p240
      $region58: #{tpu_custom_call.1} parent=55 // pred_check_branch
        %764 = sbr.rel (%p762) target = $region60
      $region59: #{tpu_custom_call.1} parent=55 // pred_region
        %s765 = smul.u32 2, %s26
        %p766 = scmp.lt.s32.totalorder %s25, 1
        %s767 = scalar_select %p766, %s25, 1
        %p768 = scmp.lt.s32.totalorder %s765, 1
        %s769 = scalar_select %p768, %s765, 1
        %s770 = smul.addr %s767, 4
        %s771 = sadd.s32 %s769, %s770
        %s772 = smul.addr %s771, 8
        %s773 = scalar_lea.vmem %s7, %s772
      $region60: #{tpu_custom_call.1} parent=55 // pred_fallthru
        _
    $region56: #{tpu_custom_call.1} parent=5 // pred_fallthru
      _
  $region6: #{tpu_custom_call.1} parent=0 // loop_footer
    %s18 = sadd.s32 1, %s14
  $region7: #{tpu_custom_call.1} parent=0 // loop_footer_branch
    %13 = sbr.rel target = $region3
  $region8: #{tpu_custom_call.1} parent=0 // loop_exit
    _

</llo_original>
